<compile_context>
chip_gen: v6e
topology: v6e:2x2x1
jax: 0.10.0
libtpu: 0.0.40
codegen_flags: <defaults>
</compile_context>

<pallas_src>
import jax
import jax.numpy as jnp
from jax.experimental import pallas as pl
from jax.experimental.pallas import tpu as pltpu


def loss_weight_kernel(wl_ref, out_ref):
    # wl_ref : (2, 4) f32 in VMEM. Row 0 = the 4 learnable weights,
    #          row 1 = the 4 scalar losses. Both rows share one vreg tile.
    # out_ref: (1, 1) f32 in SMEM (scalar store; skips the padded-tile vector
    #          store / writeback path entirely).
    w = wl_ref[0:1, :]                      # (1, 4) weights
    l = wl_ref[1:2, :]                      # (1, 4) losses
    sig = jax.nn.sigmoid(w)                 # single EUP logistic
    out_ref[0, 0] = jnp.sum(sig * l)        # VPU mul + XLU reduce -> SMEM scalar


def loss_weight_forward(weights, l_c, l_theta, l_h, l_emb):
    """weights: (4,) f32 params; l_*: scalar losses. Returns (1,) f32 like torch."""
    losses = jnp.stack([
        jnp.asarray(l_c, jnp.float32).reshape(()),
        jnp.asarray(l_theta, jnp.float32).reshape(()),
        jnp.asarray(l_h, jnp.float32).reshape(()),
        jnp.asarray(l_emb, jnp.float32).reshape(()),
    ])                                                       # (4,)
    wl = jnp.stack([weights.astype(jnp.float32).reshape(4), losses])  # (2, 4)

    out = pl.pallas_call(
        loss_weight_kernel,
        out_shape=jax.ShapeDtypeStruct((1, 1), jnp.float32),
        in_specs=[pl.BlockSpec(memory_space=pltpu.MemorySpace.VMEM)],
        out_specs=pl.BlockSpec(memory_space=pltpu.MemorySpace.SMEM),
    )(wl)
    # torch: sigmoid(Parameter(shape=(1,))) * scalar -> shape (1,)
    return out.reshape(1)


if __name__ == "__main__":
    # Deterministic parameter init: torch.zeros(1) + 0.001 for each of the 4 params.
    weights = jnp.full((4,), 0.001, dtype=jnp.float32)

    # Deterministic example scalar losses.
    key = jax.random.PRNGKey(0)
    k1, k2, k3, k4 = jax.random.split(key, 4)
    l_c = jax.random.uniform(k1, (), jnp.float32)
    l_theta = jax.random.uniform(k2, (), jnp.float32)
    l_h = jax.random.uniform(k3, (), jnp.float32)
    l_emb = jax.random.uniform(k4, (), jnp.float32)

    out = loss_weight_forward(weights, l_c, l_theta, l_h, l_emb)
    out = jax.block_until_ready(out)

    # Pure-JAX reference check (same math as the torch forward).
    sig = jax.nn.sigmoid(weights)
    ref = sig[0] * l_c + sig[1] * l_theta + sig[2] * l_h + sig[3] * l_emb
    assert out.shape == (1,)
    assert jnp.allclose(out[0], ref, rtol=1e-6, atol=1e-6)

    print("KERNEL_OK")
</pallas_src>

<mosaic_0001>
module attributes {stable_mosaic.version = 11 : i64} {
  func.func @loss_weight_kernel(%arg0: memref<2x4xf32, #tpu.memory_space<vmem>>, %arg1: memref<1x1xf32, #tpu.memory_space<smem>>) attributes {dimension_semantics = [], scalar_prefetch = 0 : i64, scratch_operands = 0 : i64, tpu.core_type = #tpu.core_type<tc>} {
    %c0 = arith.constant 0 : index
    %c0_0 = arith.constant 0 : index
    %0 = vector.load %arg0[%c0, %c0_0] : memref<2x4xf32, #tpu.memory_space<vmem>>, vector<1x4xf32>
    %c1 = arith.constant 1 : index
    %c0_1 = arith.constant 0 : index
    %1 = vector.load %arg0[%c1, %c0_1] : memref<2x4xf32, #tpu.memory_space<vmem>>, vector<1x4xf32>
    %2 = arith.negf %0 : vector<1x4xf32>
    %3 = math.exp %2 : vector<1x4xf32>
    %cst = arith.constant 1.000000e+00 : f32
    %4 = vector.broadcast %cst : f32 to vector<1x4xf32>
    %5 = arith.addf %4, %3 : vector<1x4xf32>
    %6 = arith.divf %4, %5 : vector<1x4xf32>
    %7 = arith.mulf %6, %1 : vector<1x4xf32>
    %8 = vector.shape_cast %7 : vector<1x4xf32> to vector<1x1x4xf32>
    %cst_2 = arith.constant dense<0.000000e+00> : vector<1xf32>
    %9 = vector.multi_reduction <add>, %8, %cst_2 [1, 2] : vector<1x1x4xf32> to vector<1xf32>
    %10 = vector.shape_cast %9 : vector<1xf32> to vector<1x1x1xf32>
    %11 = vector.extract %10[0, 0, 0] : f32 from vector<1x1x1xf32>
    %c0_3 = arith.constant 0 : index
    %c0_4 = arith.constant 0 : index
    %12 = memref.load %arg1[%c0_3, %c0_4] : memref<1x1xf32, #tpu.memory_space<smem>>
    memref.store %11, %arg1[%c0_3, %c0_4] : memref<1x1xf32, #tpu.memory_space<smem>>
    return
  }
}

</mosaic_0001>

<llo_original>
// kernel: tpu_custom_call.1
$region0: #{tpu_custom_call.1}
  #allocation0 [shape = 'u32[]', space=smem, size = 0x4, offset = 0x4, fixed_abs, tag = 'smem constant byte address 0x4 - core index']
  #allocation1 [shape = 'u32[144,128]{1,0:T(1,128)}', space=vmem, size = 0x12000, scoped, tag = 'internal scratch']
  %s0 = inlined_call_operand.hbm [shape: f32[2,4], index: 0, kind: input, shape index: {}]
  %s1 = inlined_call_operand.hbm [shape: f32[1,1], index: 1, kind: output, shape index: {}]
  %s2 = sld [smem:[#allocation0]]
  $region18: #{tpu_custom_call.1} parent=0
    _
  %s4 = ssub.s32 1, %s2
  %s5 = scalar_select 0, %s4, %s2
  $region1: #{tpu_custom_call.1} parent=0
    #allocation2 [shape = 'u8[1024]{0}', space=vmem, size = 0x400, scoped, tag = 'input window, operand 0, single buffered']
    #allocation3 [shape = 's32[1]{0}', space=sflag, size = 0x4, scoped, tag = 'scoped memory for tpu_custom_call.1']
    #allocation4 [shape = 's32[1]{0}', space=sflag, size = 0x4, scoped, tag = 'scoped memory for tpu_custom_call.1']
    #allocation5 [shape = 'u8[512]{0}', space=smem, size = 0x200, scoped, tag = 'output window, operand 0, single buffered']
    %6 = vsyncpa [#allocation3], 0
    %7 = vsyncpa [#allocation4], 0
    // Predicated region
    $region2: #{tpu_custom_call.1} parent=1 // pred_check
      _
    $region3: #{tpu_custom_call.1} parent=1 // pred_check_branch
      %9 = sbr.rel (0) target = $region5
    $region4: #{tpu_custom_call.1} parent=1 // pred_region
      %s11 = ssub.s32 32, 32
      %12 = vsyncadd [#allocation3], %s11
      %s14 = sshll.u32 [#allocation2], 4
      %s15 = int_to_ptr.vmem [resolvable:$true] %s14
      %17 = dma.hbm_to_vmem [thread:$0]  %s0, 32, %s15, [#allocation3]
    $region5: #{tpu_custom_call.1} parent=1 // pred_fallthru
      _
    // Predicated region
    $region6: #{tpu_custom_call.1} parent=1 // pred_check
      _
    $region7: #{tpu_custom_call.1} parent=1 // pred_check_branch
      %19 = sbr.rel (0) target = $region9
    $region8: #{tpu_custom_call.1} parent=1 // pred_region
      %20 = dma.done [#allocation3], 32
    $region9: #{tpu_custom_call.1} parent=1 // pred_fallthru
      _
    %v21 = vld [vmem:[#allocation2] sm:$0x1]
    %v22 = vld [vmem:[#allocation2 + $0x1] sm:$0x1]
    %v23 = vxor.u32 %v21, 2147483648
    %v24 = vmul.f32 %v23, 1.442695
    %v25 = vpow.pop %v24
    %v26 = vadd.f32 %v25, 1.0
    %v27 = vrcp.pop %v26
    %v28 = vmul.f32 1.0, %v27
    %v29 = vmul.f32 %v28, %v22
    %vm30 = vcmask 24576
    %v31 = vsel %vm30, %v29, 0.0
    %32 = vadd.xlane.f32.xlu0 %v31
    %v33 = vpop.xlane.xlu0 %32
    %v34 = vrot.slane %v33, 4
    %v35 = vadd.f32 %v33, %v34
    %v36 = vrot.slane %v35, 2
    %v37 = vadd.f32 %v35, %v36
    %v38 = vrot.slane %v37, 1
    %v39 = vadd.f32 %v37, %v38
    %s40 = vtos %v39
    %s41 = scalar_lea.smem [#allocation5], 0
    %42 = sst [smem:[%s41]] %s40
    // Predicated region
    $region10: #{tpu_custom_call.1} parent=1 // pred_check
      _
    $region11: #{tpu_custom_call.1} parent=1 // pred_check_branch
      %44 = sbr.rel (0) target = $region13
    $region12: #{tpu_custom_call.1} parent=1 // pred_region
      %s46 = ssub.s32 16, 16
      %47 = vsyncadd [#allocation4], %s46
      %50 = dma.smem_to_hbm [#allocation5], 16, %s1, [#allocation4]
    $region13: #{tpu_custom_call.1} parent=1 // pred_fallthru
      _
    // Predicated region
    $region14: #{tpu_custom_call.1} parent=1 // pred_check
      _
    $region15: #{tpu_custom_call.1} parent=1 // pred_check_branch
      %52 = sbr.rel (0) target = $region17
    $region16: #{tpu_custom_call.1} parent=1 // pred_region
      %53 = dma.done [#allocation4], 16
    $region17: #{tpu_custom_call.1} parent=1 // pred_fallthru
      _
    %54 = sfence
    %55 = vsyncpa [#allocation3], 1
    %56 = vsyncpa [#allocation4], 1

</llo_original>
